<compile_context>
chip_gen: v5e
topology: v5e:2x2
jax: 0.10.0
libtpu: 0.0.40
codegen_flags: <defaults>
</compile_context>

<pallas_src>
import functools

import jax
import jax.numpy as jnp
from jax import lax
from jax.experimental import pallas as pl
from jax.experimental.pallas import tpu as pltpu


def _round_up(v, m):
    return ((v + m - 1) // m) * m


def _pad_last(t, target):
    pad = target - t.shape[-1]
    if pad == 0:
        return t
    cfg = [(0, 0)] * (t.ndim - 1) + [(0, pad)]
    return jnp.pad(t, cfg)


def _ipa_attn_kernel(a_ref, b_ref, v_ref, o_ref, *, attn_v_precision):
    """Fused attention core for one (batch*head, query-tile) grid step.

    a_ref : (1, TQ, Kp)  packed (lane-padded) query-side logit features
    b_ref : (1, N,  Kp)  packed (lane-padded) key-side logit features
    v_ref : (1, N,  Dp)  packed (lane-padded) values [v_scalar | v_point (global)]
    o_ref : (1, TQ, Dp)  packed (lane-padded) attention output
    """
    f32 = jnp.float32
    a = a_ref[0]
    bk = b_ref[0]
    v = v_ref[0]

    dn_last = (((1,), (1,)), ((), ()))   # contract last dims: A @ B^T
    dn_mm = (((1,), (0,)), ((), ()))     # ordinary matmul

    # One MXU push for scalar + point logits (scaling pre-baked, zero pad lanes
    # contribute nothing).
    logits = lax.dot_general(a, bk, dn_last, precision=lax.Precision.HIGHEST,
                             preferred_element_type=f32)

    # Numerically stable softmax over keys; the per-row reciprocal is cheap and
    # replaces an n^2 VALU divide with an n^2 multiply.
    logits = logits - jnp.max(logits, axis=-1, keepdims=True)
    e = jnp.exp(logits)
    denom = jnp.sum(e, axis=-1, keepdims=True)
    attn = e * pl.reciprocal(denom, approx=False)

    # One MXU push for both scalar and point value sums (lane-dense output).
    o_ref[0] = lax.dot_general(attn, v, dn_mm, precision=attn_v_precision,
                               preferred_element_type=f32)


def _pick_q_tile(n, max_tile=256):
    for t in (256, 128, 64, 32, 16, 8):
        if t <= max_tile and n % t == 0:
            return t
    return n  # full-length query block (allowed when it equals the array dim)


def make_params(key, dim, heads, dim_head, point_dim, kv_dim=None):
    if kv_dim is None:
        kv_dim = dim
    ks = jax.random.split(key, 8)
    s = 0.05
    f32 = jnp.float32
    return {
        'Wqs': s * jax.random.normal(ks[0], (heads * dim_head, dim), f32),
        'Wks': s * jax.random.normal(ks[1], (heads * dim_head, kv_dim), f32),
        'Wvs': s * jax.random.normal(ks[2], (heads * dim_head, kv_dim), f32),
        'Wqp': s * jax.random.normal(ks[3], (point_dim * heads * 3, dim), f32),
        'Wkp': s * jax.random.normal(ks[4], (point_dim * heads * 3, kv_dim), f32),
        'Wvp': s * jax.random.normal(ks[5], (point_dim * heads * 3, kv_dim), f32),
        'point_weights': jnp.full((heads,), jnp.log(jnp.exp(1.0) - 1.0), f32),
        'Wout': s * jax.random.normal(ks[6], (dim, heads * (dim_head + point_dim * 4)), f32),
        'bout': s * jax.random.normal(ks[7], (dim,), f32),
    }


def invariant_point_attention(x, rotations, translations, params, *,
                              heads, dim_head, point_dim, eps=1e-8, mask=None,
                              attn_v_precision=lax.Precision.DEFAULT):
    # TODO(synk): optional attention mask (mask != None) not implemented in kernel path.
    assert mask is None
    b, n, dim = x.shape
    h, dh, p = heads, dim_head, point_dim
    f32 = jnp.float32

    # ---- linear projections (glue) ----
    qs = x @ params['Wqs'].T
    ks = x @ params['Wks'].T
    vs = x @ params['Wvs'].T
    qp = x @ params['Wqp'].T
    kp = x @ params['Wkp'].T
    vp = x @ params['Wvp'].T

    def heads_scalar(t):   # (b, n, h*dh) -> (b, h, n, dh)
        return t.reshape(b, n, h, dh).transpose(0, 2, 1, 3)

    def heads_point(t):    # (b, n, h*p*3) -> (b, h, n, p, 3)
        return t.reshape(b, n, h, p, 3).transpose(0, 2, 1, 3, 4)

    qs, ks, vs = heads_scalar(qs), heads_scalar(ks), heads_scalar(vs)
    qp, kp, vp = heads_point(qp), heads_point(kp), heads_point(vp)

    # ---- rigid transforms into the global frame (glue; O(n)) ----
    R = rotations                       # (b, n, 3, 3)
    T = translations                    # (b, n, 3)
    t_b = T[:, None, :, None, :]        # (b, 1, n, 1, 3)
    qp_g = jnp.einsum('bncr,bhndr->bhndc', R, qp) + t_b
    kp_g = jnp.einsum('bncr,bhndr->bhndc', R, kp) + t_b
    vp_g = jnp.einsum('bncr,bhndr->bhndc', R, vp) + t_b

    qp_f = qp_g.reshape(b, h, n, 3 * p)
    kp_f = kp_g.reshape(b, h, n, 3 * p)
    vp_f = vp_g.reshape(b, h, n, 3 * p)

    scalar_scale = (2 * dh) ** -0.5
    point_scale = (2 * p * (9 / 2)) ** -0.5
    c = jax.nn.softplus(params['point_weights']) * point_scale     # (h,), > 0
    c_b = c[None, :, None, None].astype(f32)
    sc_b = jnp.sqrt(c_b)

    qsq = jnp.sum(qp_f * qp_f, axis=-1, keepdims=True)
    ksq = jnp.sum(kp_f * kp_f, axis=-1, keepdims=True)
    ones = jnp.ones_like(qsq)

    # Fused logit features: A @ B^T == scalar logits + point-distance logits.
    a_feat = jnp.concatenate([qs * scalar_scale, sc_b * qp_f, -0.5 * c_b * qsq, ones], axis=-1)
    b_feat = jnp.concatenate([ks, sc_b * kp_f, ones, -0.5 * c_b * ksq], axis=-1)
    v_feat = jnp.concatenate([vs, vp_f], axis=-1)

    bh = b * h
    kd = dh + 3 * p + 2
    dv = dh + 3 * p
    # Lane-density: pad packed widths to multiples of 128 so kernel loads and
    # (especially) the output stores are unmasked; the zero lanes cancel exactly.
    kd_p = _round_up(kd, 128)
    dv_p = _round_up(dv, 128)

    a_feat = _pad_last(a_feat.reshape(bh, n, kd).astype(f32), kd_p)
    b_feat = _pad_last(b_feat.reshape(bh, n, kd).astype(f32), kd_p)
    v_feat = _pad_last(v_feat.reshape(bh, n, dv).astype(f32), dv_p)

    tq = _pick_q_tile(n)
    nq = n // tq

    # Explicit VMEM budget: double-buffered key-side blocks + query/output tiles
    # + logits intermediates; clamp to stay comfortably under the v7x 64 MiB cap.
    work_set = 4 * (2 * (n * kd_p + n * dv_p) + 2 * (tq * kd_p + tq * dv_p) + 3 * tq * n)
    vmem_limit = int(min(max(2 * work_set, 32 * 1024 * 1024), 48 * 1024 * 1024))

    kernel = functools.partial(_ipa_attn_kernel, attn_v_precision=attn_v_precision)

    out = pl.pallas_call(
        kernel,
        grid=(bh, nq),
        in_specs=[
            pl.BlockSpec((1, tq, kd_p), lambda i, j: (i, j, 0)),
            # Key-side blocks: constant block index along j -> stay VMEM-resident
            # across the inner q-tile loop (no re-DMA per q tile).
            pl.BlockSpec((1, n, kd_p), lambda i, j: (i, 0, 0)),
            pl.BlockSpec((1, n, dv_p), lambda i, j: (i, 0, 0)),
        ],
        out_specs=pl.BlockSpec((1, tq, dv_p), lambda i, j: (i, j, 0)),
        out_shape=jax.ShapeDtypeStruct((bh, n, dv_p), f32),
        compiler_params=pltpu.CompilerParams(
            dimension_semantics=("parallel", "parallel"),
            vmem_limit_bytes=vmem_limit),
    )(a_feat, b_feat, v_feat)

    # ---- unpack, back-transform to local frame, norms (glue; O(n)) ----
    out = out[..., :dv].reshape(b, h, n, dv)
    rs = out[..., :dh]                                   # (b, h, n, dh)
    rp_g = out[..., dh:].reshape(b, h, n, p, 3)          # global-frame points
    rp = jnp.einsum('bnrc,bhndr->bhndc', R, rp_g - t_b)  # R^T (x - t)
    rn = jnp.sqrt(jnp.sum(rp * rp, axis=-1) + eps)       # (b, h, n, p)

    # recombine heads exactly like the PyTorch rearranges
    rs = rs.transpose(0, 2, 1, 3).reshape(b, n, h * dh)
    rp = rp.transpose(0, 2, 1, 3, 4).reshape(b, n, h * p * 3)   # 'b n (h d c)'
    rn = rn.transpose(0, 2, 1, 3).reshape(b, n, h * p)          # 'b n (h d)'
    feats = jnp.concatenate([rs, rp, rn], axis=-1)
    return feats @ params['Wout'].T + params['bout']


def ipa_reference(x, rotations, translations, params, *, heads, dim_head, point_dim, eps=1e-8):
    """Pure-JAX reference matching the PyTorch forward, for validation."""
    b, n, dim = x.shape
    h, dh, p = heads, dim_head, point_dim
    qs = x @ params['Wqs'].T
    ks = x @ params['Wks'].T
    vs = x @ params['Wvs'].T
    qp = x @ params['Wqp'].T
    kp = x @ params['Wkp'].T
    vp = x @ params['Wvp'].T
    sh_s = lambda t: t.reshape(b, n, h, dh).transpose(0, 2, 1, 3).reshape(b * h, n, dh)
    sh_p = lambda t: t.reshape(b, n, h, p, 3).transpose(0, 2, 1, 3, 4).reshape(b * h, n, p, 3)
    qs, ks, vs = map(sh_s, (qs, ks, vs))
    qp, kp, vp = map(sh_p, (qp, kp, vp))
    R = jnp.broadcast_to(rotations[:, None], (b, h, n, 3, 3)).reshape(b * h, n, 3, 3)
    T = jnp.broadcast_to(translations[:, None], (b, h, n, 3)).reshape(b * h, n, 3)
    qp = jnp.einsum('bncr,bndr->bndc', R, qp) + T[:, :, None, :]
    kp = jnp.einsum('bncr,bndr->bndc', R, kp) + T[:, :, None, :]
    vp = jnp.einsum('bncr,bndr->bndc', R, vp) + T[:, :, None, :]
    scalar_scale = (2 * dh) ** -0.5
    point_scale = (2 * p * (9 / 2)) ** -0.5
    logits = jnp.einsum('bid,bjd->bij', qs, ks) * scalar_scale
    diff = qp[:, :, None] - kp[:, None]
    pdist = jnp.sum(diff ** 2, axis=(-1, -2))
    pw = jnp.tile(jax.nn.softplus(params['point_weights']), (b,))[:, None, None]
    logits = logits - 0.5 * pdist * pw * point_scale
    attn = jax.nn.softmax(logits, axis=-1)
    rscalar = jnp.einsum('bij,bjd->bid', attn, vs)
    rpoints = jnp.einsum('bij,bjdc->bidc', attn, vp)
    rpoints = jnp.einsum('bnrc,bndr->bndc', R, rpoints - T[:, :, None, :])
    rnorm = jnp.sqrt(jnp.sum(rpoints ** 2, axis=-1) + eps)
    rs = rscalar.reshape(b, h, n, dh).transpose(0, 2, 1, 3).reshape(b, n, h * dh)
    rp = rpoints.reshape(b, h, n, p, 3).transpose(0, 2, 1, 3, 4).reshape(b, n, h * p * 3)
    rn = rnorm.reshape(b, h, n, p).transpose(0, 2, 1, 3).reshape(b, n, h * p)
    feats = jnp.concatenate([rs, rp, rn], axis=-1)
    return feats @ params['Wout'].T + params['bout']


if __name__ == "__main__":
    # Glue + reference run at highest matmul precision; the in-kernel attn@V
    # precision is passed explicitly (DEFAULT).
    jax.config.update("jax_default_matmul_precision", "highest")

    b, n, dim = 2, 8, 32
    heads, dim_head, point_dim = 2, 16, 4

    key = jax.random.PRNGKey(0)
    kx, kr, kt, kparam = jax.random.split(key, 4)
    x = jax.random.normal(kx, (b, n, dim), jnp.float32)
    rotations = jax.random.normal(kr, (b, n, 3, 3), jnp.float32)
    translations = jax.random.normal(kt, (b, n, 3), jnp.float32)
    params = make_params(kparam, dim, heads, dim_head, point_dim)

    out = invariant_point_attention(x, rotations, translations, params,
                                    heads=heads, dim_head=dim_head, point_dim=point_dim)
    out = jax.block_until_ready(out)

    ref = ipa_reference(x, rotations, translations, params,
                        heads=heads, dim_head=dim_head, point_dim=point_dim)
    assert out.shape == (b, n, dim), out.shape
    # Tolerance accommodates the DEFAULT-precision attn@V matmul inside the kernel;
    # pass attn_v_precision=lax.Precision.HIGHEST for tighter numerics.
    assert jnp.allclose(out, ref, rtol=1e-2, atol=1e-2), float(jnp.max(jnp.abs(out - ref)))
    print("KERNEL_OK")
</pallas_src>

<mosaic_0001>
module attributes {stable_mosaic.version = 11 : i64} {
  func.func @_ipa_attn_kernel(%arg0: i32, %arg1: i32, %arg2: memref<1x8x128xf32, #tpu.memory_space<vmem>>, %arg3: memref<1x8x128xf32, #tpu.memory_space<vmem>>, %arg4: memref<1x8x128xf32, #tpu.memory_space<vmem>>, %arg5: memref<1x8x128xf32, #tpu.memory_space<vmem>>) attributes {dimension_semantics = [#tpu.dimension_semantics<parallel>, #tpu.dimension_semantics<parallel>], iteration_bounds = array<i64: 4, 1>, scalar_prefetch = 0 : i64, scratch_operands = 0 : i64, tpu.core_type = #tpu.core_type<tc>, window_params = [{transform_indices = @transform_0, window_bounds = array<i64: 1, 8, 128>}, {transform_indices = @transform_1, window_bounds = array<i64: 1, 8, 128>}, {transform_indices = @transform_2, window_bounds = array<i64: 1, 8, 128>}, {transform_indices = @transform_3, window_bounds = array<i64: 1, 8, 128>}]} {
    %c0 = arith.constant 0 : index
    %c0_0 = arith.constant 0 : index
    %c0_1 = arith.constant 0 : index
    %0 = vector.load %arg2[%c0, %c0_0, %c0_1] : memref<1x8x128xf32, #tpu.memory_space<vmem>>, vector<1x8x128xf32>
    %1 = vector.shape_cast %0 : vector<1x8x128xf32> to vector<8x128xf32>
    %c0_2 = arith.constant 0 : index
    %c0_3 = arith.constant 0 : index
    %c0_4 = arith.constant 0 : index
    %2 = vector.load %arg3[%c0_2, %c0_3, %c0_4] : memref<1x8x128xf32, #tpu.memory_space<vmem>>, vector<1x8x128xf32>
    %3 = vector.shape_cast %2 : vector<1x8x128xf32> to vector<8x128xf32>
    %c0_5 = arith.constant 0 : index
    %c0_6 = arith.constant 0 : index
    %c0_7 = arith.constant 0 : index
    %4 = vector.load %arg4[%c0_5, %c0_6, %c0_7] : memref<1x8x128xf32, #tpu.memory_space<vmem>>, vector<1x8x128xf32>
    %5 = vector.shape_cast %4 : vector<1x8x128xf32> to vector<8x128xf32>
    %cst = arith.constant dense<0.000000e+00> : vector<8x8xf32>
    %6 = tpu.matmul %1, %3, %cst {dimension_numbers = #tpu.dot_dimension_numbers<[1], [1], [0], [0], [0, 0, 1, 0], [], []>, precision = #tpu.contract_precision<fp32>} : vector<8x128xf32>, vector<8x128xf32>, vector<8x8xf32> -> vector<8x8xf32>
    %cst_8 = arith.constant dense<0xFF800000> : vector<8xf32>
    %7 = vector.multi_reduction <maximumf>, %6, %cst_8 [1] : vector<8x8xf32> to vector<8xf32>
    %8 = vector.shape_cast %7 : vector<8xf32> to vector<8x1xf32>
    %9 = vector.broadcast %8 : vector<8x1xf32> to vector<8x8xf32>
    %10 = arith.subf %6, %9 : vector<8x8xf32>
    %11 = math.exp %10 : vector<8x8xf32>
    %cst_9 = arith.constant dense<0.000000e+00> : vector<8xf32>
    %12 = vector.multi_reduction <add>, %11, %cst_9 [1] : vector<8x8xf32> to vector<8xf32>
    %13 = vector.shape_cast %12 : vector<8xf32> to vector<8x1xf32>
    %14 = tpu.reciprocal %13 : vector<8x1xf32> -> vector<8x1xf32>
    %15 = vector.broadcast %14 : vector<8x1xf32> to vector<8x8xf32>
    %16 = arith.mulf %11, %15 : vector<8x8xf32>
    %cst_10 = arith.constant dense<0.000000e+00> : vector<8x128xf32>
    %17 = tpu.matmul %16, %5, %cst_10 {dimension_numbers = #tpu.dot_dimension_numbers<[1], [0], [0], [1], [0, 0, 1, 1], [], []>} : vector<8x8xf32>, vector<8x128xf32>, vector<8x128xf32> -> vector<8x128xf32>
    %c0_11 = arith.constant 0 : index
    %c0_12 = arith.constant 0 : index
    %c0_13 = arith.constant 0 : index
    %18 = vector.load %arg5[%c0_11, %c0_12, %c0_13] : memref<1x8x128xf32, #tpu.memory_space<vmem>>, vector<1x8x128xf32>
    %19 = vector.shape_cast %18 : vector<1x8x128xf32> to vector<8x128xf32>
    %20 = vector.shape_cast %17 : vector<8x128xf32> to vector<1x8x128xf32>
    tpu.vector_store %arg5[%c0_11, %c0_12, %c0_13], %20 {strides = array<i32>} : memref<1x8x128xf32, #tpu.memory_space<vmem>>, vector<1x8x128xf32>,
    return
  }
  func.func @transform_0(%arg0: i32, %arg1: i32) -> (i32, i32, i32) {
    %c0_i32 = arith.constant 0 : i32
    %c0_i32_0 = arith.constant 0 : i32
    return %arg0, %arg1, %c0_i32 : i32, i32, i32
  }
  func.func @transform_1(%arg0: i32, %arg1: i32) -> (i32, i32, i32) {
    %c0_i32 = arith.constant 0 : i32
    %c0_i32_0 = arith.constant 0 : i32
    %c0_i32_1 = arith.constant 0 : i32
    return %arg0, %c0_i32, %c0_i32_0 : i32, i32, i32
  }
  func.func @transform_2(%arg0: i32, %arg1: i32) -> (i32, i32, i32) {
    %c0_i32 = arith.constant 0 : i32
    %c0_i32_0 = arith.constant 0 : i32
    %c0_i32_1 = arith.constant 0 : i32
    return %arg0, %c0_i32, %c0_i32_0 : i32, i32, i32
  }
  func.func @transform_3(%arg0: i32, %arg1: i32) -> (i32, i32, i32) {
    %c0_i32 = arith.constant 0 : i32
    %c0_i32_0 = arith.constant 0 : i32
    return %arg0, %arg1, %c0_i32 : i32, i32, i32
  }
}

</mosaic_0001>

<llo_original>
// kernel: tpu_custom_call.1
$region0: #{tpu_custom_call.1}
  #allocation0 [shape = 'u32[]', space=smem, size = 0x4, offset = 0x4, fixed_abs, tag = 'smem constant byte address 0x4 - core index']
  #allocation1 [shape = 'u32[72,128]{1,0:T(1,128)}', space=vmem, size = 0x9000, scoped, tag = 'internal scratch']
  %s0 = inlined_call_operand.hbm [shape: f32[4,8,128], index: 0, kind: input, shape index: {}]
  %s1 = inlined_call_operand.hbm [shape: f32[4,8,128], index: 1, kind: input, shape index: {}]
  %s2 = inlined_call_operand.hbm [shape: f32[4,8,128], index: 2, kind: input, shape index: {}]
  %s3 = inlined_call_operand.hbm [shape: f32[4,8,128], index: 3, kind: output, shape index: {}]
  %s4 = sld [smem:[#allocation0]]
  $region57: #{tpu_custom_call.1} parent=0
    _
  %s6 = ssub.s32 1, %s4
  %s7 = scalar_select 0, %s6, %s4
  $region1: #{tpu_custom_call.1} parent=0
    #allocation2 [shape = 'u8[8192]{0}', space=vmem, size = 0x2000, scoped, tag = 'input window, operand 0']
    #allocation3 [shape = 's32[2]{0}', space=sflag, size = 0x8, scoped, tag = 'scoped memory for tpu_custom_call.1']
    #allocation4 [shape = 's32[2]{0}', space=sflag, size = 0x8, scoped, tag = 'scoped memory for tpu_custom_call.1']
    #allocation5 [shape = 'u8[8192]{0}', space=vmem, size = 0x2000, scoped, tag = 'input window, operand 1']
    #allocation6 [shape = 's32[2]{0}', space=sflag, size = 0x8, scoped, tag = 'scoped memory for tpu_custom_call.1']
    #allocation7 [shape = 'u8[8192]{0}', space=vmem, size = 0x2000, scoped, tag = 'input window, operand 2']
    #allocation8 [shape = 'u8[8192]{0}', space=vmem, size = 0x2000, scoped, tag = 'output window, operand 0']
    %8 = vsyncpa [#allocation3], 0
    %s9 = scalar_lea.sflag [#allocation3], 1
    %10 = vsyncpa %s9, 0
    %11 = vsyncpa [#allocation6], 0
    %s12 = scalar_lea.sflag [#allocation6], 1
    %13 = vsyncpa %s12, 0
    %14 = vsyncpa [#allocation4], 0
    %s15 = scalar_lea.sflag [#allocation4], 1
    %16 = vsyncpa %s15, 0
    loop: start=0, step=1, limit=6
    $region2: #{tpu_custom_call.1} parent=1 // loop_pre_header
      _
    $region3: #{tpu_custom_call.1} parent=1 // loop_header
      %s18 = sphi 0, %s22
      %p19 = scmp.ge.s32.totalorder %s18, 6
      %s25 = sphi 0, %s37
      %s26 = sphi 0, %s33
      %s27 = sphi 0, %s25
      %s28 = sphi 0, %s26
      %s29 = sphi 0, %s27
      %s30 = sphi 0, %s28
      %s42 = sphi 0, %s44
      %s45 = sphi 0, %s42
      %s46 = sphi 0, %s45
      %s62 = sphi 0, %s46
      %s68 = sphi 0, %s70
      %s71 = sphi 0, %s68
      %s72 = sphi 0, %s71
      %s88 = sphi 0, %s72
      %s94 = sphi 0, %s96
      %s97 = sphi 0, %s94
      %s98 = sphi 0, %s97
      %s114 = sphi 0, %s98
      %s122 = sphi 0, %s124
      %s125 = sphi 0, %s122
      %s126 = sphi 0, %s125
      %s142 = sphi 0, %s126
    $region4: #{tpu_custom_call.1} parent=1 // loop_header_branch
      %21 = sbr.rel (%p19) target = $region8
    $region5: #{tpu_custom_call.1} parent=1 // loop_body
      %s23 = ssub.s32 %s18, 1
      %s24 = ssub.s32 %s18, 2
      %s31 = sadd.s32 1, %s26
      %p32 = scmp.ge.s32.totalorder %s31, 1
      %s33 = scalar_select %p32, 0, %s31
      %s34 = sadd.s32 1, %s25
      %s35 = scalar_select %p32, %s34, %s25
      %p36 = scmp.ge.s32.totalorder %s35, 4
      %s37 = scalar_select %p36, 0, %s35
      %s38 = ssub.s32 %s25, %s37
      %s39 = ssub.s32 %s26, %s33
      %s40 = sor.u32 %s38, %s39
      %p41 = scmp.eq.s32.totalorder %s40, 0
      %s43 = sadd.s32 %s42, 1
      %s44 = scalar_select %p41, %s42, %s43
      %p47 = pneg %p41
      %p48 = scmp.eq.s32.totalorder %s18, 3
      %p49 = por %p47, %p48
      %p50 = scmp.ne.s32.totalorder %s42, %s45
      %p51 = scmp.eq.s32.totalorder %s18, 0
      %p52 = por %p50, %p51
      %p53 = scmp.ne.s32.totalorder %s42, %s45
      %p54 = scmp.eq.s32.totalorder %s23, 3
      %p55 = por %p53, %p54
      %p56 = scmp.ne.s32.totalorder %s45, %s46
      %p57 = scmp.eq.s32.totalorder %s23, 0
      %p58 = por %p56, %p57
      %p59 = scmp.ne.s32.totalorder %s45, %s46
      %p60 = scmp.eq.s32.totalorder %s24, 3
      %p61 = por %p59, %p60
      %p63 = scmp.ne.s32.totalorder %s46, %s62
      %p64 = scmp.eq.s32.totalorder %s24, 0
      %p65 = por %p63, %p64
      %s66 = ssub.s32 %s25, %s37
      %p67 = scmp.eq.s32.totalorder %s66, 0
      %s69 = sadd.s32 %s68, 1
      %s70 = scalar_select %p67, %s68, %s69
      %p73 = pneg %p67
      %p74 = scmp.eq.s32.totalorder %s18, 3
      %p75 = por %p73, %p74
      %p76 = scmp.ne.s32.totalorder %s68, %s71
      %p77 = scmp.eq.s32.totalorder %s18, 0
      %p78 = por %p76, %p77
      %p79 = scmp.ne.s32.totalorder %s68, %s71
      %p80 = scmp.eq.s32.totalorder %s23, 3
      %p81 = por %p79, %p80
      %p82 = scmp.ne.s32.totalorder %s71, %s72
      %p83 = scmp.eq.s32.totalorder %s23, 0
      %p84 = por %p82, %p83
      %p85 = scmp.ne.s32.totalorder %s71, %s72
      %p86 = scmp.eq.s32.totalorder %s24, 3
      %p87 = por %p85, %p86
      %p89 = scmp.ne.s32.totalorder %s72, %s88
      %p90 = scmp.eq.s32.totalorder %s24, 0
      %p91 = por %p89, %p90
      %s92 = ssub.s32 %s25, %s37
      %p93 = scmp.eq.s32.totalorder %s92, 0
      %s95 = sadd.s32 %s94, 1
      %s96 = scalar_select %p93, %s94, %s95
      %p99 = pneg %p93
      %p100 = scmp.eq.s32.totalorder %s18, 3
      %p101 = por %p99, %p100
      %p102 = scmp.ne.s32.totalorder %s94, %s97
      %p103 = scmp.eq.s32.totalorder %s18, 0
      %p104 = por %p102, %p103
      %p105 = scmp.ne.s32.totalorder %s94, %s97
      %p106 = scmp.eq.s32.totalorder %s23, 3
      %p107 = por %p105, %p106
      %p108 = scmp.ne.s32.totalorder %s97, %s98
      %p109 = scmp.eq.s32.totalorder %s23, 0
      %p110 = por %p108, %p109
      %p111 = scmp.ne.s32.totalorder %s97, %s98
      %p112 = scmp.eq.s32.totalorder %s24, 3
      %p113 = por %p111, %p112
      %p115 = scmp.ne.s32.totalorder %s98, %s114
      %p116 = scmp.eq.s32.totalorder %s24, 0
      %p117 = por %p115, %p116
      %s118 = ssub.s32 %s25, %s37
      %s119 = ssub.s32 %s26, %s33
      %s120 = sor.u32 %s118, %s119
      %p121 = scmp.eq.s32.totalorder %s120, 0
      %s123 = sadd.s32 %s122, 1
      %s124 = scalar_select %p121, %s122, %s123
      %p127 = pneg %p121
      %p128 = scmp.eq.s32.totalorder %s18, 3
      %p129 = por %p127, %p128
      %p130 = scmp.ne.s32.totalorder %s122, %s125
      %p131 = scmp.eq.s32.totalorder %s18, 0
      %p132 = por %p130, %p131
      %p133 = scmp.ne.s32.totalorder %s122, %s125
      %p134 = scmp.eq.s32.totalorder %s23, 3
      %p135 = por %p133, %p134
      %p136 = scmp.ne.s32.totalorder %s125, %s126
      %p137 = scmp.eq.s32.totalorder %s23, 0
      %p138 = por %p136, %p137
      %p139 = scmp.ne.s32.totalorder %s125, %s126
      %p140 = scmp.eq.s32.totalorder %s24, 3
      %p141 = por %p139, %p140
      %p143 = scmp.ne.s32.totalorder %s126, %s142
      %p144 = scmp.eq.s32.totalorder %s24, 0
      %p145 = por %p143, %p144
      %p146 = scmp.le.s32.totalorder 1, %s18
      %p147 = scmp.lt.s32.totalorder %s18, 5
      %p148 = pnand %p146, %p147
      %p149 = pneg %p148
      // Predicated region
      $region9: #{tpu_custom_call.1} parent=5 // pred_check
        _
      $region10: #{tpu_custom_call.1} parent=5 // pred_check_branch
        %151 = sbr.rel (%p148) target = $region12
      $region11: #{tpu_custom_call.1} parent=5 // pred_region
        %s152 = ssub.s32 %s18, 1
      $region12: #{tpu_custom_call.1} parent=5 // pred_fallthru
        _
      %p153 = scmp.lt.s32.totalorder %s18, 4
      // Predicated region
      $region13: #{tpu_custom_call.1} parent=5 // pred_check
        %p154 = pneg %p153
      $region14: #{tpu_custom_call.1} parent=5 // pred_check_branch
        %156 = sbr.rel (%p154) target = $region16
      $region15: #{tpu_custom_call.1} parent=5 // pred_region
        // Predicated region
        $region17: #{tpu_custom_call.1} parent=15 // pred_check
          %p157 = pneg %p52
        $region18: #{tpu_custom_call.1} parent=15 // pred_check_branch
          %159 = sbr.rel (%p157) target = $region20
        $region19: #{tpu_custom_call.1} parent=15 // pred_region
          %s160 = sand.u32 %s42, 1
          %s161 = scalar_lea.sflag [#allocation3], %s160
          %s162 = sand.u32 %s42, 1
          %s163 = smul.addr %s162, 8
          %s164 = scalar_lea.vmem [#allocation2], %s163
          %166 = vsyncadd %s161, 0
          %s167 = sadd.s32 %s26, %s25
          %s168 = smul.addr %s167, 8
          %s169 = scalar_lea.hbm %s0, %s168
          %s171 = sshll.u32 %s169, 4
          %s172 = int_to_ptr.hbm [resolvable:$true] %s171
          %s173 = sshll.u32 %s164, 4
          %s174 = int_to_ptr.vmem [resolvable:$true] %s173
          %176 = dma.hbm_to_vmem [thread:$0]  %s172, 128, %s174, %s161
        $region20: #{tpu_custom_call.1} parent=15 // pred_fallthru
          _
        // Predicated region
        $region21: #{tpu_custom_call.1} parent=15 // pred_check
          %p177 = pneg %p78
        $region22: #{tpu_custom_call.1} parent=15 // pred_check_branch
          %179 = sbr.rel (%p177) target = $region24
        $region23: #{tpu_custom_call.1} parent=15 // pred_region
          %s180 = sand.u32 %s18, 1
          %s181 = scalar_lea.sflag [#allocation6], %s180
          %s182 = sand.u32 %s68, 1
          %s183 = smul.addr %s182, 8
          %s184 = scalar_lea.vmem [#allocation5], %s183
          %186 = vsyncadd %s181, 0
          %s187 = smul.addr %s25, 8
          %s188 = scalar_lea.hbm %s1, %s187
          %s190 = sshll.u32 %s188, 4
          %s191 = int_to_ptr.hbm [resolvable:$true] %s190
          %s192 = sshll.u32 %s184, 4
          %s193 = int_to_ptr.vmem [resolvable:$true] %s192
          %195 = dma.hbm_to_vmem [thread:$0]  %s191, 128, %s193, %s181
        $region24: #{tpu_custom_call.1} parent=15 // pred_fallthru
          _
        // Predicated region
        $region25: #{tpu_custom_call.1} parent=15 // pred_check
          %p196 = pneg %p104
        $region26: #{tpu_custom_call.1} parent=15 // pred_check_branch
          %198 = sbr.rel (%p196) target = $region28
        $region27: #{tpu_custom_call.1} parent=15 // pred_region
          %s199 = sand.u32 %s18, 1
          %s200 = scalar_lea.sflag [#allocation6], %s199
          %s201 = sand.u32 %s94, 1
          %s202 = smul.addr %s201, 8
          %s203 = scalar_lea.vmem [#allocation7], %s202
          %205 = vsyncadd %s200, 0
          %s206 = smul.addr %s25, 8
          %s207 = scalar_lea.hbm %s2, %s206
          %s209 = sshll.u32 %s207, 4
          %s210 = int_to_ptr.hbm [resolvable:$true] %s209
          %s211 = sshll.u32 %s203, 4
          %s212 = int_to_ptr.vmem [resolvable:$true] %s211
          %214 = dma.hbm_to_vmem [thread:$0]  %s210, 128, %s212, %s200
        $region28: #{tpu_custom_call.1} parent=15 // pred_fallthru
          _
      $region16: #{tpu_custom_call.1} parent=5 // pred_fallthru
        _
      %p215 = scmp.le.s32.totalorder 1, %s18
      %p216 = scmp.lt.s32.totalorder %s18, 5
      %p217 = pnand %p215, %p216
      %p218 = pneg %p217
      // Predicated region
      $region29: #{tpu_custom_call.1} parent=5 // pred_check
        _
      $region30: #{tpu_custom_call.1} parent=5 // pred_check_branch
        %220 = sbr.rel (%p217) target = $region32
      $region31: #{tpu_custom_call.1} parent=5 // pred_region
        %s221 = ssub.s32 %s18, 1
        %s222 = sand.u32 %s45, 1
        %s223 = scalar_lea.sflag [#allocation3], %s222
        %s224 = sand.u32 %s45, 1
        %s225 = smul.addr %s224, 8
        %s226 = scalar_lea.vmem [#allocation2], %s225
        // Predicated region
        $region33: #{tpu_custom_call.1} parent=31 // pred_check
          %p227 = pneg %p58
        $region34: #{tpu_custom_call.1} parent=31 // pred_check_branch
          %229 = sbr.rel (%p227) target = $region36
        $region35: #{tpu_custom_call.1} parent=31 // pred_region
          %231 = dma.done %s223, 128
        $region36: #{tpu_custom_call.1} parent=31 // pred_fallthru
          _
        %s232 = sand.u32 %s23, 1
        %s233 = scalar_lea.sflag [#allocation6], %s232
        %s234 = sand.u32 %s71, 1
        %s235 = smul.addr %s234, 8
        %s236 = scalar_lea.vmem [#allocation5], %s235
        // Predicated region
        $region37: #{tpu_custom_call.1} parent=31 // pred_check
          %p237 = pneg %p84
        $region38: #{tpu_custom_call.1} parent=31 // pred_check_branch
          %239 = sbr.rel (%p237) target = $region40
        $region39: #{tpu_custom_call.1} parent=31 // pred_region
          %241 = dma.done %s233, 128
        $region40: #{tpu_custom_call.1} parent=31 // pred_fallthru
          _
        %s242 = sand.u32 %s23, 1
        %s243 = scalar_lea.sflag [#allocation6], %s242
        %s244 = sand.u32 %s97, 1
        %s245 = smul.addr %s244, 8
        %s246 = scalar_lea.vmem [#allocation7], %s245
        // Predicated region
        $region41: #{tpu_custom_call.1} parent=31 // pred_check
          %p247 = pneg %p110
        $region42: #{tpu_custom_call.1} parent=31 // pred_check_branch
          %249 = sbr.rel (%p247) target = $region44
        $region43: #{tpu_custom_call.1} parent=31 // pred_region
          %251 = dma.done %s243, 128
        $region44: #{tpu_custom_call.1} parent=31 // pred_fallthru
          _
        %s252 = sand.u32 %s45, 1
        %s253 = scalar_lea.sflag [#allocation3], %s252
        %s254 = sand.u32 %s45, 1
        %s255 = smul.addr %s254, 8
        %s256 = scalar_lea.vmem [#allocation2], %s255
        %p257 = pneg %p58
        %p258 = pneg %p55
        %s259 = sand.u32 %s23, 1
        %s260 = scalar_lea.sflag [#allocation6], %s259
        %s261 = sand.u32 %s71, 1
        %s262 = smul.addr %s261, 8
        %s263 = scalar_lea.vmem [#allocation5], %s262
        %p264 = pneg %p84
        %p265 = pneg %p81
        %s266 = sand.u32 %s23, 1
        %s267 = scalar_lea.sflag [#allocation6], %s266
        %s268 = sand.u32 %s97, 1
        %s269 = smul.addr %s268, 8
        %s270 = scalar_lea.vmem [#allocation7], %s269
        %p271 = pneg %p110
        %p272 = pneg %p107
        %p273 = pneg %p138
        %p274 = pneg %p135
        %s275 = sand.u32 %s125, 1
        %s276 = scalar_lea.sflag [#allocation4], %s275
        %s277 = sand.u32 %s125, 1
        %s278 = smul.addr %s277, 8
        %s279 = scalar_lea.vmem [#allocation8], %s278
        %v280 = vld [vmem:[%s226] sm:$0xff]
        %v281 = vld [vmem:[%s236] sm:$0xff]
        %v282 = vld [vmem:[%s246] sm:$0xff]
        %283 = vmatpush.xpose.msra.mxu0 0.0
        %284 = vmatpush.xpose.msra.mxu0 0.0
        %285 = vmatpush.xpose.msra.mxu0 0.0
        %286 = vmatpush.xpose.msra.mxu0 0.0
        %287 = vmatpush.xpose.msra.mxu0 0.0
        %288 = vmatpush.xpose.msra.mxu0 0.0
        %289 = vmatpush.xpose.msra.mxu0 0.0
        %290 = vmatpush.xpose.msra.mxu0 0.0
        %291 = vmatpush.xpose.msra.mxu0 0.0
        %292 = vmatpush.xpose.msra.mxu0 0.0
        %293 = vmatpush.xpose.msra.mxu0 0.0
        %294 = vmatpush.xpose.msra.mxu0 0.0
        %295 = vmatpush.xpose.msra.mxu0 0.0
        %296 = vmatpush.xpose.msra.mxu0 0.0
        %297 = vmatpush.xpose.msra.mxu0 0.0
        %v298 = vand.u32 %v281, 4294901760
        %299 = vmatpush.xpose.msra.mxu0 %v298
        %v300 = vand.u32 %v280, 4294901760
        %v301 = vsub.f32 %v280, %v300
        %v302 = vand.u32 %v301, 4294901760
        %v303 = vsub.f32 %v301, %v302
        %v304 = vand.u32 %v303, 4294901760
        %305 = vmatmul.f32.gmra.mxu0 %v304
        %v306 = vpop.f32.mrf.mxu0
        %v307 = vadd.f32 0.0, %v306
        %308 = vdwg.mxu0
        %309 = vmatpush.xpose.msra.mxu0 0.0
        %310 = vmatpush.xpose.msra.mxu0 0.0
        %311 = vmatpush.xpose.msra.mxu0 0.0
        %312 = vmatpush.xpose.msra.mxu0 0.0
        %313 = vmatpush.xpose.msra.mxu0 0.0
        %314 = vmatpush.xpose.msra.mxu0 0.0
        %315 = vmatpush.xpose.msra.mxu0 0.0
        %316 = vmatpush.xpose.msra.mxu0 0.0
        %317 = vmatpush.xpose.msra.mxu0 0.0
        %318 = vmatpush.xpose.msra.mxu0 0.0
        %319 = vmatpush.xpose.msra.mxu0 0.0
        %320 = vmatpush.xpose.msra.mxu0 0.0
        %321 = vmatpush.xpose.msra.mxu0 0.0
        %322 = vmatpush.xpose.msra.mxu0 0.0
        %323 = vmatpush.xpose.msra.mxu0 0.0
        %v324 = vand.u32 %v281, 4294901760
        %v325 = vsub.f32 %v281, %v324
        %v326 = vand.u32 %v325, 4294901760
        %v327 = vsub.f32 %v325, %v326
        %v328 = vand.u32 %v327, 4294901760
        %329 = vmatpush.xpose.msra.mxu0 %v328
        %v330 = vand.u32 %v280, 4294901760
        %331 = vmatmul.f32.gmra.mxu0 %v330
        %v332 = vpop.f32.mrf.mxu0
        %v333 = vadd.f32 %v307, %v332
        %334 = vdwg.mxu0
        %335 = vmatpush.xpose.msra.mxu0 0.0
        %336 = vmatpush.xpose.msra.mxu0 0.0
        %337 = vmatpush.xpose.msra.mxu0 0.0
        %338 = vmatpush.xpose.msra.mxu0 0.0
        %339 = vmatpush.xpose.msra.mxu0 0.0
        %340 = vmatpush.xpose.msra.mxu0 0.0
        %341 = vmatpush.xpose.msra.mxu0 0.0
        %342 = vmatpush.xpose.msra.mxu0 0.0
        %343 = vmatpush.xpose.msra.mxu0 0.0
        %344 = vmatpush.xpose.msra.mxu0 0.0
        %345 = vmatpush.xpose.msra.mxu0 0.0
        %346 = vmatpush.xpose.msra.mxu0 0.0
        %347 = vmatpush.xpose.msra.mxu0 0.0
        %348 = vmatpush.xpose.msra.mxu0 0.0
        %349 = vmatpush.xpose.msra.mxu0 0.0
        %v350 = vand.u32 %v281, 4294901760
        %v351 = vsub.f32 %v281, %v350
        %352 = vmatpush.xpose.msra.mxu0 %v351
        %v353 = vand.u32 %v280, 4294901760
        %v354 = vsub.f32 %v280, %v353
        %355 = vmatmul.f32.gmra.mxu0 %v354
        %v356 = vpop.f32.mrf.mxu0
        %v357 = vadd.f32 %v333, %v356
        %358 = vdwg.mxu0
        %359 = vmatpush.xpose.msra.mxu0 0.0
        %360 = vmatpush.xpose.msra.mxu0 0.0
        %361 = vmatpush.xpose.msra.mxu0 0.0
        %362 = vmatpush.xpose.msra.mxu0 0.0
        %363 = vmatpush.xpose.msra.mxu0 0.0
        %364 = vmatpush.xpose.msra.mxu0 0.0
        %365 = vmatpush.xpose.msra.mxu0 0.0
        %366 = vmatpush.xpose.msra.mxu0 0.0
        %367 = vmatpush.xpose.msra.mxu0 0.0
        %368 = vmatpush.xpose.msra.mxu0 0.0
        %369 = vmatpush.xpose.msra.mxu0 0.0
        %370 = vmatpush.xpose.msra.mxu0 0.0
        %371 = vmatpush.xpose.msra.mxu0 0.0
        %372 = vmatpush.xpose.msra.mxu0 0.0
        %373 = vmatpush.xpose.msra.mxu0 0.0
        %v374 = vand.u32 %v281, 4294901760
        %375 = vmatpush.xpose.msra.mxu0 %v374
        %v376 = vand.u32 %v280, 4294901760
        %v377 = vsub.f32 %v280, %v376
        %v378 = vand.u32 %v377, 4294901760
        %379 = vmatmul.f32.gmra.mxu0 %v378
        %v380 = vpop.f32.mrf.mxu0
        %v381 = vadd.f32 %v357, %v380
        %382 = vdwg.mxu0
        %383 = vmatpush.xpose.msra.mxu0 0.0
        %384 = vmatpush.xpose.msra.mxu0 0.0
        %385 = vmatpush.xpose.msra.mxu0 0.0
        %386 = vmatpush.xpose.msra.mxu0 0.0
        %387 = vmatpush.xpose.msra.mxu0 0.0
        %388 = vmatpush.xpose.msra.mxu0 0.0
        %389 = vmatpush.xpose.msra.mxu0 0.0
        %390 = vmatpush.xpose.msra.mxu0 0.0
        %391 = vmatpush.xpose.msra.mxu0 0.0
        %392 = vmatpush.xpose.msra.mxu0 0.0
        %393 = vmatpush.xpose.msra.mxu0 0.0
        %394 = vmatpush.xpose.msra.mxu0 0.0
        %395 = vmatpush.xpose.msra.mxu0 0.0
        %396 = vmatpush.xpose.msra.mxu0 0.0
        %397 = vmatpush.xpose.msra.mxu0 0.0
        %v398 = vand.u32 %v281, 4294901760
        %v399 = vsub.f32 %v281, %v398
        %v400 = vand.u32 %v399, 4294901760
        %401 = vmatpush.xpose.msra.mxu0 %v400
        %v402 = vand.u32 %v280, 4294901760
        %403 = vmatmul.f32.gmra.mxu0 %v402
        %v404 = vpop.f32.mrf.mxu0
        %v405 = vadd.f32 %v381, %v404
        %406 = vdwg.mxu0
        %407 = vmatpush.xpose.msra.mxu0 0.0
        %408 = vmatpush.xpose.msra.mxu0 0.0
        %409 = vmatpush.xpose.msra.mxu0 0.0
        %410 = vmatpush.xpose.msra.mxu0 0.0
        %411 = vmatpush.xpose.msra.mxu0 0.0
        %412 = vmatpush.xpose.msra.mxu0 0.0
        %413 = vmatpush.xpose.msra.mxu0 0.0
        %414 = vmatpush.xpose.msra.mxu0 0.0
        %415 = vmatpush.xpose.msra.mxu0 0.0
        %416 = vmatpush.xpose.msra.mxu0 0.0
        %417 = vmatpush.xpose.msra.mxu0 0.0
        %418 = vmatpush.xpose.msra.mxu0 0.0
        %419 = vmatpush.xpose.msra.mxu0 0.0
        %420 = vmatpush.xpose.msra.mxu0 0.0
        %421 = vmatpush.xpose.msra.mxu0 0.0
        %v422 = vand.u32 %v281, 4294901760
        %423 = vmatpush.xpose.msra.mxu0 %v422
        %v424 = vand.u32 %v280, 4294901760
        %425 = vmatmul.f32.gmra.mxu0 %v424
        %v426 = vpop.f32.mrf.mxu0
        %v427 = vadd.f32 %v405, %v426
        %428 = vdwg.mxu0
        %vm429 = vcmask 64512
        %v430 = vsel %vm429, %v427, -inf
        %431 = vmax.xlane.f32.xlu0 %v430
        %v432 = vpop.xlane.xlu0 %431
        %v433 = vsub.f32 %v427, %v432
        %v434 = vmul.f32 %v433, 1.442695
        %v435 = vpow.pop %v434
        %v436 = vsel %vm429, %v435, 0.0
        %437 = vadd.xlane.f32.xlu0 %v436
        %v438 = vpop.xlane.xlu0 %437
        %v439 = vrcp.pop %v438
        %v440 = vmul.f32 %v438, %v439
        %v441 = vsub.f32 1.0, %v440
        %v442 = vmul.f32 %v439, %v441
        %v443 = vadd.f32 %v439, %v442
        %vm444 = vweird.f32 %v438
        %vm445 = vweird.f32 %v439
        %vm446 = vmor %vm444, %vm445
        %v447 = vsel %vm446, %v439, %v443
        %v448 = vand.u32 2147483647, %v438
        %vm449 = vcmp.eq.f32.partialorder %v448, 8.507059e+37
        %v450 = vand.u32 %v438, 2147483648
        %v451 = vor.u32 1.1754944e-38, %v450
        %v452 = vsel %vm449, %v451, %v447
        %v453 = vmul.f32 %v435, %v452
        %v455 = vsel %vm429, %v453, 0
        %457 = vmatpush.msra.mxu0 0.0
        %458 = vmatpush.msra.mxu0 0.0
        %459 = vmatpush.msra.mxu0 0.0
        %460 = vmatpush.msra.mxu0 0.0
        %461 = vmatpush.msra.mxu0 0.0
        %462 = vmatpush.msra.mxu0 0.0
        %463 = vmatpush.msra.mxu0 0.0
        %464 = vmatpush.msra.mxu0 0.0
        %465 = vmatpush.msra.mxu0 0.0
        %466 = vmatpush.msra.mxu0 0.0
        %467 = vmatpush.msra.mxu0 0.0
        %468 = vmatpush.msra.mxu0 0.0
        %469 = vmatpush.msra.mxu0 0.0
        %470 = vmatpush.msra.mxu0 0.0
        %471 = vmatpush.msra.mxu0 0.0
        %472 = vmatpush.msra.mxu0 %v282
        %473 = vmatmul.f32.gmra.mxu0 %v455
        %v474 = vpop.f32.mrf.mxu0
        %v475 = vadd.f32 0.0, %v474
        %476 = vdwg.mxu0
        %477 = vst [vmem:[%s279] sm:$0xff] %v475
        %s478 = sand.u32 %s125, 1
        %s479 = scalar_lea.sflag [#allocation4], %s478
        %s480 = sand.u32 %s125, 1
        %s481 = smul.addr %s480, 8
        %s482 = scalar_lea.vmem [#allocation8], %s481
        // Predicated region
        $region45: #{tpu_custom_call.1} parent=31 // pred_check
          %p483 = pneg %p135
        $region46: #{tpu_custom_call.1} parent=31 // pred_check_branch
          %485 = sbr.rel (%p483) target = $region48
        $region47: #{tpu_custom_call.1} parent=31 // pred_region
          %487 = vsyncadd %s479, 0
          %s488 = sadd.s32 %s28, %s27
          %s489 = smul.addr %s488, 8
          %s490 = scalar_lea.hbm %s3, %s489
          %s492 = sshll.u32 %s482, 4
          %s493 = int_to_ptr.vmem [resolvable:$true] %s492
          %s494 = sshll.u32 %s490, 4
          %s495 = int_to_ptr.hbm [resolvable:$true] %s494
          %497 = dma.vmem_to_hbm [thread:$0]  %s493, 128, %s495, %s479
        $region48: #{tpu_custom_call.1} parent=31 // pred_fallthru
          _
      $region32: #{tpu_custom_call.1} parent=5 // pred_fallthru
        _
      %p498 = scmp.le.s32.totalorder 2, %s18
      // Predicated region
      $region49: #{tpu_custom_call.1} parent=5 // pred_check
        %p499 = pneg %p498
      $region50: #{tpu_custom_call.1} parent=5 // pred_check_branch
        %501 = sbr.rel (%p499) target = $region52
      $region51: #{tpu_custom_call.1} parent=5 // pred_region
        %s502 = ssub.s32 %s18, 2
        // Predicated region
        $region53: #{tpu_custom_call.1} parent=51 // pred_check
          %p503 = pneg %p141
        $region54: #{tpu_custom_call.1} parent=51 // pred_check_branch
          %505 = sbr.rel (%p503) target = $region56
        $region55: #{tpu_custom_call.1} parent=51 // pred_region
          %s506 = sand.u32 %s126, 1
          %s507 = scalar_lea.sflag [#allocation4], %s506
          %s508 = sand.u32 %s126, 1
          %s509 = smul.addr %s508, 8
          %s510 = scalar_lea.vmem [#allocation8], %s509
          %512 = dma.done %s507, 128
        $region56: #{tpu_custom_call.1} parent=51 // pred_fallthru
          _
      $region52: #{tpu_custom_call.1} parent=5 // pred_fallthru
        _
    $region6: #{tpu_custom_call.1} parent=1 // loop_footer
      %s22 = sadd.s32 1, %s18
    $region7: #{tpu_custom_call.1} parent=1 // loop_footer_branch
      %17 = sbr.rel target = $region3
    $region8: #{tpu_custom_call.1} parent=1 // loop_exit
      _
    %513 = vsyncpa [#allocation3], 1
    %s514 = scalar_lea.sflag [#allocation3], 1
    %515 = vsyncpa %s514, 1
    %516 = vsyncpa [#allocation6], 1
    %s517 = scalar_lea.sflag [#allocation6], 1
    %518 = vsyncpa %s517, 1
    %519 = vsyncpa [#allocation4], 1
    %s520 = scalar_lea.sflag [#allocation4], 1
    %521 = vsyncpa %s520, 1

</llo_original>
